<compile_context>
chip_gen: v7x
topology: tpu7x:2x2x1
jax: 0.10.0
libtpu: 0.0.40
codegen_flags: <defaults>
</compile_context>

<pallas_src>
import functools

import jax
import jax.numpy as jnp
from jax.experimental import pallas as pl
from jax.experimental.pallas import tpu as pltpu

LANE = 128      # lane width (last dim)
SUBLANE = 8     # f32 sublane width (second-to-last dim)


def _round_up(n, m):
    return ((n + m - 1) // m) * m


def _pad2d(a, rows, cols):
    r, c = a.shape
    return jnp.pad(a, ((0, rows - r), (0, cols - c)))


def mlp_softmax_kernel(x_ref, w1_ref, b1_ref, w2_ref, b2_ref, w3_ref, b3_ref,
                       o_ref, *, nout):
    # Layer 1..3: sigmoid(x @ W + b), f32 accumulation on the MXU.
    x = x_ref[...]
    h1 = jax.nn.sigmoid(
        jnp.dot(x, w1_ref[...], preferred_element_type=jnp.float32) + b1_ref[...])
    h2 = jax.nn.sigmoid(
        jnp.dot(h1, w2_ref[...], preferred_element_type=jnp.float32) + b2_ref[...])
    h3 = jax.nn.sigmoid(
        jnp.dot(h2, w3_ref[...], preferred_element_type=jnp.float32) + b3_ref[...])

    # Softmax over the real classes only: padded class lanes -> -inf -> exp 0.
    lane = jax.lax.broadcasted_iota(jnp.int32, h3.shape, dimension=1)
    h3 = jnp.where(lane < nout, h3, -jnp.inf)
    m = jnp.max(h3, axis=-1, keepdims=True)
    e = jnp.exp(h3 - m)
    denom = jnp.sum(e, axis=-1, keepdims=True)
    o_ref[...] = (e * pl.reciprocal(denom, approx=False)).astype(o_ref.dtype)


def classification_net_forward(x, params, *, tb=512):
    """x: [B, ninputs] f32; params: pre-transposed weights W:[in,out], b:[1,out]."""
    w1, b1 = params["w1"], params["b1"]
    w2, b2 = params["w2"], params["b2"]
    w3, b3 = params["w3"], params["b3"]
    B, nin = x.shape
    nh1, nh2, nout = w1.shape[1], w2.shape[1], w3.shape[1]

    # Lane-dense padding of every feature dim.
    nin_p = _round_up(nin, LANE)
    nh1_p = _round_up(nh1, LANE)
    nh2_p = _round_up(nh2, LANE)
    nout_p = _round_up(nout, LANE)

    # Batch tile: multiple of the f32 sublane, large enough to amortize the
    # per-grid-step overhead, small enough for v7x's 64 MiB VMEM (double
    # buffering of x/out at these widths is ~1 MiB even at TB=512).
    TB = min(tb, _round_up(B, SUBLANE))
    B_p = _round_up(B, TB)
    grid = (pl.cdiv(B_p, TB),)

    # Zero padding keeps semantics exact: padded x cols / weight rows & cols are
    # zero, so padded hidden lanes (sigmoid(0)=0.5) never feed real outputs.
    x_p = _pad2d(x, B_p, nin_p)
    w1_p, b1_p = _pad2d(w1, nin_p, nh1_p), _pad2d(b1, 1, nh1_p)
    w2_p, b2_p = _pad2d(w2, nh1_p, nh2_p), _pad2d(b2, 1, nh2_p)
    w3_p, b3_p = _pad2d(w3, nh2_p, nout_p), _pad2d(b3, 1, nout_p)

    batch_spec = lambda cols: pl.BlockSpec((TB, cols), lambda i: (i, 0))
    resident = lambda shape: pl.BlockSpec(shape, lambda i: (0, 0))  # DMA'd once

    out_p = pl.pallas_call(
        functools.partial(mlp_softmax_kernel, nout=nout),
        out_shape=jax.ShapeDtypeStruct((B_p, nout_p), jnp.float32),
        grid=grid,
        in_specs=[
            batch_spec(nin_p),
            resident(w1_p.shape), resident(b1_p.shape),
            resident(w2_p.shape), resident(b2_p.shape),
            resident(w3_p.shape), resident(b3_p.shape),
        ],
        out_specs=batch_spec(nout_p),
        compiler_params=pltpu.CompilerParams(
            dimension_semantics=("parallel",)),
    )(x_p, w1_p, b1_p, w2_p, b2_p, w3_p, b3_p)

    return out_p[:B, :nout]


def init_params(key, ninputs, nhidden, nhidden2, noutputs):
    """Deterministic init matching nn.Linear shapes (stored transposed: [in, out])."""
    ks = jax.random.split(key, 6)

    def lin(kw, kb, fan_in, fan_out):
        bound = 1.0 / jnp.sqrt(fan_in)
        w = jax.random.uniform(kw, (fan_in, fan_out), jnp.float32, -bound, bound)
        b = jax.random.uniform(kb, (1, fan_out), jnp.float32, -bound, bound)
        return w, b

    w1, b1 = lin(ks[0], ks[1], ninputs, nhidden)
    w2, b2 = lin(ks[2], ks[3], nhidden, nhidden2)
    w3, b3 = lin(ks[4], ks[5], nhidden2, noutputs)
    return {"w1": w1, "b1": b1, "w2": w2, "b2": b2, "w3": w3, "b3": b3}


if __name__ == "__main__":
    # Small shapes consistent with the module: batch=8, 16 input features,
    # hidden=32, hidden2=24, 4 output classes.
    B, ninputs, nhidden, nhidden2, noutputs = 8, 16, 32, 24, 4

    key = jax.random.PRNGKey(0)
    kx, kp = jax.random.split(key)
    x = jax.random.normal(kx, (B, ninputs), jnp.float32)
    params = init_params(kp, ninputs, nhidden, nhidden2, noutputs)

    out = jax.block_until_ready(classification_net_forward(x, params))

    # Sanity check against a pure-JAX reference of the same forward pass.
    def ref(x, p):
        h = jax.nn.sigmoid(x @ p["w1"] + p["b1"])
        h = jax.nn.sigmoid(h @ p["w2"] + p["b2"])
        h = jax.nn.sigmoid(h @ p["w3"] + p["b3"])
        return jax.nn.softmax(h, axis=1)

    expected = jax.block_until_ready(ref(x, params))
    assert out.shape == (B, noutputs)
    assert jnp.allclose(out, expected, atol=1e-5, rtol=1e-5)
    assert jnp.allclose(jnp.sum(out, axis=1), 1.0, atol=1e-5)

    print("KERNEL_OK")
</pallas_src>

<mosaic_0001>
module attributes {stable_mosaic.version = 11 : i64} {
  func.func @mlp_softmax_kernel(%arg0: i32, %arg1: memref<8x128xf32, #tpu.memory_space<vmem>>, %arg2: memref<128x128xf32, #tpu.memory_space<vmem>>, %arg3: memref<1x128xf32, #tpu.memory_space<vmem>>, %arg4: memref<128x128xf32, #tpu.memory_space<vmem>>, %arg5: memref<1x128xf32, #tpu.memory_space<vmem>>, %arg6: memref<128x128xf32, #tpu.memory_space<vmem>>, %arg7: memref<1x128xf32, #tpu.memory_space<vmem>>, %arg8: memref<8x128xf32, #tpu.memory_space<vmem>>) attributes {dimension_semantics = [#tpu.dimension_semantics<parallel>], iteration_bounds = array<i64: 1>, scalar_prefetch = 0 : i64, scratch_operands = 0 : i64, tpu.core_type = #tpu.core_type<tc>, window_params = [{transform_indices = @transform_0, window_bounds = array<i64: 8, 128>}, {pipeline_mode = #tpu.pipeline_mode<synchronous>, transform_indices = @transform_1, window_bounds = array<i64: 128, 128>}, {pipeline_mode = #tpu.pipeline_mode<synchronous>, transform_indices = @transform_2, window_bounds = array<i64: 1, 128>}, {pipeline_mode = #tpu.pipeline_mode<synchronous>, transform_indices = @transform_3, window_bounds = array<i64: 128, 128>}, {pipeline_mode = #tpu.pipeline_mode<synchronous>, transform_indices = @transform_4, window_bounds = array<i64: 1, 128>}, {pipeline_mode = #tpu.pipeline_mode<synchronous>, transform_indices = @transform_5, window_bounds = array<i64: 128, 128>}, {pipeline_mode = #tpu.pipeline_mode<synchronous>, transform_indices = @transform_6, window_bounds = array<i64: 1, 128>}, {transform_indices = @transform_7, window_bounds = array<i64: 8, 128>}]} {
    %c0 = arith.constant 0 : index
    %c0_0 = arith.constant 0 : index
    %0 = vector.load %arg1[%c0, %c0_0] : memref<8x128xf32, #tpu.memory_space<vmem>>, vector<8x128xf32>
    %c0_1 = arith.constant 0 : index
    %c0_2 = arith.constant 0 : index
    %1 = vector.load %arg2[%c0_1, %c0_2] : memref<128x128xf32, #tpu.memory_space<vmem>>, vector<128x128xf32>
    %cst = arith.constant dense<0.000000e+00> : vector<8x128xf32>
    %2 = tpu.matmul %0, %1, %cst {dimension_numbers = #tpu.dot_dimension_numbers<[1], [0], [0], [1], [0, 0, 1, 1], [], []>} : vector<8x128xf32>, vector<128x128xf32>, vector<8x128xf32> -> vector<8x128xf32>
    %c0_3 = arith.constant 0 : index
    %c0_4 = arith.constant 0 : index
    %3 = vector.load %arg3[%c0_3, %c0_4] : memref<1x128xf32, #tpu.memory_space<vmem>>, vector<1x128xf32>
    %4 = vector.broadcast %3 : vector<1x128xf32> to vector<8x128xf32>
    %5 = arith.addf %2, %4 : vector<8x128xf32>
    %6 = arith.negf %5 : vector<8x128xf32>
    %7 = math.exp %6 : vector<8x128xf32>
    %cst_5 = arith.constant 1.000000e+00 : f32
    %8 = vector.broadcast %cst_5 : f32 to vector<8x128xf32>
    %9 = arith.addf %8, %7 : vector<8x128xf32>
    %10 = arith.divf %8, %9 : vector<8x128xf32>
    %c0_6 = arith.constant 0 : index
    %c0_7 = arith.constant 0 : index
    %11 = vector.load %arg4[%c0_6, %c0_7] : memref<128x128xf32, #tpu.memory_space<vmem>>, vector<128x128xf32>
    %cst_8 = arith.constant dense<0.000000e+00> : vector<8x128xf32>
    %12 = tpu.matmul %10, %11, %cst_8 {dimension_numbers = #tpu.dot_dimension_numbers<[1], [0], [0], [1], [0, 0, 1, 1], [], []>} : vector<8x128xf32>, vector<128x128xf32>, vector<8x128xf32> -> vector<8x128xf32>
    %c0_9 = arith.constant 0 : index
    %c0_10 = arith.constant 0 : index
    %13 = vector.load %arg5[%c0_9, %c0_10] : memref<1x128xf32, #tpu.memory_space<vmem>>, vector<1x128xf32>
    %14 = vector.broadcast %13 : vector<1x128xf32> to vector<8x128xf32>
    %15 = arith.addf %12, %14 : vector<8x128xf32>
    %16 = arith.negf %15 : vector<8x128xf32>
    %17 = math.exp %16 : vector<8x128xf32>
    %cst_11 = arith.constant 1.000000e+00 : f32
    %18 = vector.broadcast %cst_11 : f32 to vector<8x128xf32>
    %19 = arith.addf %18, %17 : vector<8x128xf32>
    %20 = arith.divf %18, %19 : vector<8x128xf32>
    %c0_12 = arith.constant 0 : index
    %c0_13 = arith.constant 0 : index
    %21 = vector.load %arg6[%c0_12, %c0_13] : memref<128x128xf32, #tpu.memory_space<vmem>>, vector<128x128xf32>
    %cst_14 = arith.constant dense<0.000000e+00> : vector<8x128xf32>
    %22 = tpu.matmul %20, %21, %cst_14 {dimension_numbers = #tpu.dot_dimension_numbers<[1], [0], [0], [1], [0, 0, 1, 1], [], []>} : vector<8x128xf32>, vector<128x128xf32>, vector<8x128xf32> -> vector<8x128xf32>
    %c0_15 = arith.constant 0 : index
    %c0_16 = arith.constant 0 : index
    %23 = vector.load %arg7[%c0_15, %c0_16] : memref<1x128xf32, #tpu.memory_space<vmem>>, vector<1x128xf32>
    %24 = vector.broadcast %23 : vector<1x128xf32> to vector<8x128xf32>
    %25 = arith.addf %22, %24 : vector<8x128xf32>
    %26 = arith.negf %25 : vector<8x128xf32>
    %27 = math.exp %26 : vector<8x128xf32>
    %cst_17 = arith.constant 1.000000e+00 : f32
    %28 = vector.broadcast %cst_17 : f32 to vector<8x128xf32>
    %29 = arith.addf %28, %27 : vector<8x128xf32>
    %30 = arith.divf %28, %29 : vector<8x128xf32>
    %31 = tpu.iota {dimensions = array<i32: 1>} : vector<8x128xi32>
    %c4_i32 = arith.constant 4 : i32
    %32 = vector.broadcast %c4_i32 : i32 to vector<8x128xi32>
    %33 = arith.cmpi slt, %31, %32 : vector<8x128xi32>
    %cst_18 = arith.constant 0xFF800000 : f32
    %34 = vector.broadcast %cst_18 : f32 to vector<8x128xf32>
    %35 = arith.select %33, %30, %34 : vector<8x128xi1>, vector<8x128xf32>
    %cst_19 = arith.constant dense<0xFF800000> : vector<8xf32>
    %36 = vector.multi_reduction <maximumf>, %35, %cst_19 [1] : vector<8x128xf32> to vector<8xf32>
    %37 = vector.shape_cast %36 : vector<8xf32> to vector<8x1xf32>
    %38 = vector.broadcast %37 : vector<8x1xf32> to vector<8x128xf32>
    %39 = arith.subf %35, %38 : vector<8x128xf32>
    %40 = math.exp %39 : vector<8x128xf32>
    %cst_20 = arith.constant dense<0.000000e+00> : vector<8xf32>
    %41 = vector.multi_reduction <add>, %40, %cst_20 [1] : vector<8x128xf32> to vector<8xf32>
    %42 = vector.shape_cast %41 : vector<8xf32> to vector<8x1xf32>
    %43 = tpu.reciprocal %42 : vector<8x1xf32> -> vector<8x1xf32>
    %44 = vector.broadcast %43 : vector<8x1xf32> to vector<8x128xf32>
    %45 = arith.mulf %40, %44 : vector<8x128xf32>
    %c0_21 = arith.constant 0 : index
    %c0_22 = arith.constant 0 : index
    %46 = vector.load %arg8[%c0_21, %c0_22] : memref<8x128xf32, #tpu.memory_space<vmem>>, vector<8x128xf32>
    tpu.vector_store %arg8[%c0_21, %c0_22], %45 {strides = array<i32>} : memref<8x128xf32, #tpu.memory_space<vmem>>, vector<8x128xf32>,
    return
  }
  func.func @transform_0(%arg0: i32) -> (i32, i32) {
    %c0_i32 = arith.constant 0 : i32
    %c0_i32_0 = arith.constant 0 : i32
    return %arg0, %c0_i32 : i32, i32
  }
  func.func @transform_1(%arg0: i32) -> (i32, i32) {
    %c0_i32 = arith.constant 0 : i32
    %c0_i32_0 = arith.constant 0 : i32
    %c0_i32_1 = arith.constant 0 : i32
    return %c0_i32, %c0_i32_0 : i32, i32
  }
  func.func @transform_2(%arg0: i32) -> (i32, i32) {
    %c0_i32 = arith.constant 0 : i32
    %c0_i32_0 = arith.constant 0 : i32
    %c0_i32_1 = arith.constant 0 : i32
    return %c0_i32, %c0_i32_0 : i32, i32
  }
  func.func @transform_3(%arg0: i32) -> (i32, i32) {
    %c0_i32 = arith.constant 0 : i32
    %c0_i32_0 = arith.constant 0 : i32
    %c0_i32_1 = arith.constant 0 : i32
    return %c0_i32, %c0_i32_0 : i32, i32
  }
  func.func @transform_4(%arg0: i32) -> (i32, i32) {
    %c0_i32 = arith.constant 0 : i32
    %c0_i32_0 = arith.constant 0 : i32
    %c0_i32_1 = arith.constant 0 : i32
    return %c0_i32, %c0_i32_0 : i32, i32
  }
  func.func @transform_5(%arg0: i32) -> (i32, i32) {
    %c0_i32 = arith.constant 0 : i32
    %c0_i32_0 = arith.constant 0 : i32
    %c0_i32_1 = arith.constant 0 : i32
    return %c0_i32, %c0_i32_0 : i32, i32
  }
  func.func @transform_6(%arg0: i32) -> (i32, i32) {
    %c0_i32 = arith.constant 0 : i32
    %c0_i32_0 = arith.constant 0 : i32
    %c0_i32_1 = arith.constant 0 : i32
    return %c0_i32, %c0_i32_0 : i32, i32
  }
  func.func @transform_7(%arg0: i32) -> (i32, i32) {
    %c0_i32 = arith.constant 0 : i32
    %c0_i32_0 = arith.constant 0 : i32
    return %arg0, %c0_i32 : i32, i32
  }
}

</mosaic_0001>

<llo_original>
// kernel: tpu_custom_call.1
$region0: #{tpu_custom_call.1}
  #allocation0 [shape = 'u32[]', space=smem, size = 0x4, offset = 0x4, fixed_abs, tag = 'smem constant byte address 0x4 - core index']
  #allocation1 [shape = 'u32[144,128]{1,0:T(1,128)}', space=vmem, size = 0x12000, scoped, tag = 'internal scratch']
  %s0 = inlined_call_operand.hbm [shape: f32[8,128], index: 0, kind: input, shape index: {}]
  %s1 = inlined_call_operand.hbm [shape: f32[128,128], index: 1, kind: input, shape index: {}]
  %s2 = inlined_call_operand.vmem [shape: f32[1,128], index: 2, kind: input, shape index: {}]
  %s3 = inlined_call_operand.hbm [shape: f32[128,128], index: 3, kind: input, shape index: {}]
  %s4 = inlined_call_operand.vmem [shape: f32[1,128], index: 4, kind: input, shape index: {}]
  %s5 = inlined_call_operand.hbm [shape: f32[128,128], index: 5, kind: input, shape index: {}]
  %s6 = inlined_call_operand.vmem [shape: f32[1,128], index: 6, kind: input, shape index: {}]
  %s7 = inlined_call_operand.hbm [shape: f32[8,128], index: 7, kind: output, shape index: {}]
  %s8 = sld [smem:[#allocation0]]
  $region54: #{tpu_custom_call.1} parent=0
    _
  %s10 = ssub.s32 1, %s8
  %s11 = scalar_select 0, %s10, %s8
  $region1: #{tpu_custom_call.1} parent=0
    #allocation2 [shape = 'u8[4096]{0}', space=vmem, size = 0x1000, scoped, tag = 'input window, operand 0, single buffered']
    #allocation3 [shape = 's32[1]{0}', space=sflag, size = 0x4, scoped, tag = 'scoped memory for tpu_custom_call.1']
    #allocation4 [shape = 's32[1]{0}', space=sflag, size = 0x4, scoped, tag = 'scoped memory for tpu_custom_call.1']
    #allocation5 [shape = 'u8[65536]{0}', space=vmem, size = 0x10000, scoped, tag = 'input window, operand 1, single buffered']
    #allocation6 [shape = 's32[1]{0}', space=sflag, size = 0x4, scoped, tag = 'scoped memory for tpu_custom_call.1']
    #allocation7 [shape = 'u8[65536]{0}', space=vmem, size = 0x10000, scoped, tag = 'input window, operand 3, single buffered']
    #allocation8 [shape = 'u8[65536]{0}', space=vmem, size = 0x10000, scoped, tag = 'input window, operand 5, single buffered']
    #allocation9 [shape = 's32[1]{0}', space=sflag, size = 0x4, scoped, tag = 'scoped memory for tpu_custom_call.1']
    #allocation10 [shape = 'u8[4096]{0}', space=vmem, size = 0x1000, scoped, tag = 'output window, operand 0, single buffered']
    %12 = vsyncpa [#allocation3], 0
    %13 = vsyncpa [#allocation6], 0
    %14 = vsyncpa [#allocation9], 0
    %15 = vsyncpa [#allocation4], 0
    // Predicated region
    $region2: #{tpu_custom_call.1} parent=1 // pred_check
      _
    $region3: #{tpu_custom_call.1} parent=1 // pred_check_branch
      %17 = sbr.rel (0) target = $region5
    $region4: #{tpu_custom_call.1} parent=1 // pred_region
      %s19 = ssub.s32 128, 128
      %20 = vsyncadd [#allocation3], %s19
      %s22 = sshll.u32 [#allocation2], 4
      %s23 = int_to_ptr.vmem [resolvable:$true] %s22
      %25 = dma.hbm_to_vmem [thread:$0]  %s0, 128, %s23, [#allocation3]
    $region5: #{tpu_custom_call.1} parent=1 // pred_fallthru
      _
    // Predicated region
    $region6: #{tpu_custom_call.1} parent=1 // pred_check
      _
    $region7: #{tpu_custom_call.1} parent=1 // pred_check_branch
      %27 = sbr.rel (0) target = $region9
    $region8: #{tpu_custom_call.1} parent=1 // pred_region
      %s29 = ssub.s32 2048, 2048
      %30 = vsyncadd [#allocation6], %s29
      %s31 = sshll.u32 [#allocation5], 4
      %s32 = int_to_ptr.vmem [resolvable:$true] %s31
      %37 = dma.hbm_to_vmem [thread:$0]  %s1, 2048, %s32, [#allocation6], 128, 128, 8
    $region9: #{tpu_custom_call.1} parent=1 // pred_fallthru
      _
    // Predicated region
    $region10: #{tpu_custom_call.1} parent=1 // pred_check
      _
    $region11: #{tpu_custom_call.1} parent=1 // pred_check_branch
      %39 = sbr.rel (0) target = $region13
    $region12: #{tpu_custom_call.1} parent=1 // pred_region
      _
    $region13: #{tpu_custom_call.1} parent=1 // pred_fallthru
      _
    // Predicated region
    $region14: #{tpu_custom_call.1} parent=1 // pred_check
      _
    $region15: #{tpu_custom_call.1} parent=1 // pred_check_branch
      %41 = sbr.rel (0) target = $region17
    $region16: #{tpu_custom_call.1} parent=1 // pred_region
      %s43 = ssub.s32 2048, 2048
      %44 = vsyncadd [#allocation6], %s43
      %s45 = sshll.u32 [#allocation7], 4
      %s46 = int_to_ptr.vmem [resolvable:$true] %s45
      %51 = dma.hbm_to_vmem [thread:$0]  %s3, 2048, %s46, [#allocation6], 128, 128, 8
    $region17: #{tpu_custom_call.1} parent=1 // pred_fallthru
      _
    // Predicated region
    $region18: #{tpu_custom_call.1} parent=1 // pred_check
      _
    $region19: #{tpu_custom_call.1} parent=1 // pred_check_branch
      %53 = sbr.rel (0) target = $region21
    $region20: #{tpu_custom_call.1} parent=1 // pred_region
      _
    $region21: #{tpu_custom_call.1} parent=1 // pred_fallthru
      _
    // Predicated region
    $region22: #{tpu_custom_call.1} parent=1 // pred_check
      _
    $region23: #{tpu_custom_call.1} parent=1 // pred_check_branch
      %55 = sbr.rel (0) target = $region25
    $region24: #{tpu_custom_call.1} parent=1 // pred_region
      %s57 = ssub.s32 2048, 2048
      %58 = vsyncadd [#allocation9], %s57
      %s59 = sshll.u32 [#allocation8], 4
      %s60 = int_to_ptr.vmem [resolvable:$true] %s59
      %65 = dma.hbm_to_vmem [thread:$0]  %s5, 2048, %s60, [#allocation9], 128, 128, 8
    $region25: #{tpu_custom_call.1} parent=1 // pred_fallthru
      _
    // Predicated region
    $region26: #{tpu_custom_call.1} parent=1 // pred_check
      _
    $region27: #{tpu_custom_call.1} parent=1 // pred_check_branch
      %67 = sbr.rel (0) target = $region29
    $region28: #{tpu_custom_call.1} parent=1 // pred_region
      _
    $region29: #{tpu_custom_call.1} parent=1 // pred_fallthru
      _
    // Predicated region
    $region30: #{tpu_custom_call.1} parent=1 // pred_check
      _
    $region31: #{tpu_custom_call.1} parent=1 // pred_check_branch
      %69 = sbr.rel (0) target = $region33
    $region32: #{tpu_custom_call.1} parent=1 // pred_region
      %70 = dma.done [#allocation3], 128
    $region33: #{tpu_custom_call.1} parent=1 // pred_fallthru
      _
    // Predicated region
    $region34: #{tpu_custom_call.1} parent=1 // pred_check
      _
    $region35: #{tpu_custom_call.1} parent=1 // pred_check_branch
      %72 = sbr.rel (0) target = $region37
    $region36: #{tpu_custom_call.1} parent=1 // pred_region
      %73 = dma.done [#allocation6], 2048
    $region37: #{tpu_custom_call.1} parent=1 // pred_fallthru
      _
    // Predicated region
    $region38: #{tpu_custom_call.1} parent=1 // pred_check
      _
    $region39: #{tpu_custom_call.1} parent=1 // pred_check_branch
      %75 = sbr.rel (0) target = $region41
    $region40: #{tpu_custom_call.1} parent=1 // pred_region
      %76 = dma.done [#allocation6], 2048
    $region41: #{tpu_custom_call.1} parent=1 // pred_fallthru
      _
    // Predicated region
    $region42: #{tpu_custom_call.1} parent=1 // pred_check
      _
    $region43: #{tpu_custom_call.1} parent=1 // pred_check_branch
      %78 = sbr.rel (0) target = $region45
    $region44: #{tpu_custom_call.1} parent=1 // pred_region
      %79 = dma.done [#allocation9], 2048
    $region45: #{tpu_custom_call.1} parent=1 // pred_fallthru
      _
    %v80 = vld [vmem:[#allocation2] sm:$0xff]
    %v81 = vld [vmem:[#allocation5] sm:$0xff]
    %v82 = vld [vmem:[#allocation5 + $0x8] sm:$0xff]
    %v83 = vld [vmem:[#allocation5 + $0x10] sm:$0xff]
    %v84 = vld [vmem:[#allocation5 + $0x18] sm:$0xff]
    %v85 = vld [vmem:[#allocation5 + $0x20] sm:$0xff]
    %v86 = vld [vmem:[#allocation5 + $0x28] sm:$0xff]
    %v87 = vld [vmem:[#allocation5 + $0x30] sm:$0xff]
    %v88 = vld [vmem:[#allocation5 + $0x38] sm:$0xff]
    %v89 = vld [vmem:[#allocation5 + $0x40] sm:$0xff]
    %v90 = vld [vmem:[#allocation5 + $0x48] sm:$0xff]
    %v91 = vld [vmem:[#allocation5 + $0x50] sm:$0xff]
    %v92 = vld [vmem:[#allocation5 + $0x58] sm:$0xff]
    %v93 = vld [vmem:[#allocation5 + $0x60] sm:$0xff]
    %v94 = vld [vmem:[#allocation5 + $0x68] sm:$0xff]
    %v95 = vld [vmem:[#allocation5 + $0x70] sm:$0xff]
    %v96 = vld [vmem:[#allocation5 + $0x78] sm:$0xff]
    %v97 = vld [vmem:[%s2] sm:$0x1]
    %v99 = vlaneseq
    %v100 = vshrl.u32 %v99, 7
    %v101 = vsub.s32 0, %v100
    %v102 = vrot.slane %v97, %v101
    %104 = vmatprep.subr.mxu0 0.0
    %105 = vmatpush1.msra.mxu0 %v81
    %106 = vmatprep.subr.mxu0 0.0
    %107 = vmatpush1.msra.mxu0 %v82
    %108 = vmatprep.subr.mxu0 0.0
    %109 = vmatpush1.msra.mxu0 %v83
    %110 = vmatprep.subr.mxu0 0.0
    %111 = vmatpush1.msra.mxu0 %v84
    %112 = vmatprep.subr.mxu0 0.0
    %113 = vmatpush1.msra.mxu0 %v85
    %114 = vmatprep.subr.mxu0 0.0
    %115 = vmatpush1.msra.mxu0 %v86
    %116 = vmatprep.subr.mxu0 0.0
    %117 = vmatpush1.msra.mxu0 %v87
    %118 = vmatprep.subr.mxu0 0.0
    %119 = vmatpush1.msra.mxu0 %v88
    %120 = vmatprep.subr.mxu0 0.0
    %121 = vmatpush1.msra.mxu0 %v89
    %122 = vmatprep.subr.mxu0 0.0
    %123 = vmatpush1.msra.mxu0 %v90
    %124 = vmatprep.subr.mxu0 0.0
    %125 = vmatpush1.msra.mxu0 %v91
    %126 = vmatprep.subr.mxu0 0.0
    %127 = vmatpush1.msra.mxu0 %v92
    %128 = vmatprep.subr.mxu0 0.0
    %129 = vmatpush1.msra.mxu0 %v93
    %130 = vmatprep.subr.mxu0 0.0
    %131 = vmatpush1.msra.mxu0 %v94
    %132 = vmatprep.subr.mxu0 0.0
    %133 = vmatpush1.msra.mxu0 %v95
    %134 = vmatprep.subr.mxu0 0.0
    %135 = vmatpush1.msra.mxu0 %v96
    %136 = vmatprep.subr.mxu0 0.0
    %137 = vmatpush1.msra.mxu0 0.0
    %138 = vmatprep.subr.mxu0 0.0
    %139 = vmatpush1.msra.mxu0 0.0
    %140 = vmatprep.subr.mxu0 0.0
    %141 = vmatpush1.msra.mxu0 0.0
    %142 = vmatprep.subr.mxu0 0.0
    %143 = vmatpush1.msra.mxu0 0.0
    %144 = vmatprep.subr.mxu0 0.0
    %145 = vmatpush1.msra.mxu0 0.0
    %146 = vmatprep.subr.mxu0 0.0
    %147 = vmatpush1.msra.mxu0 0.0
    %148 = vmatprep.subr.mxu0 0.0
    %149 = vmatpush1.msra.mxu0 0.0
    %150 = vmatprep.subr.mxu0 0.0
    %151 = vmatpush1.msra.mxu0 0.0
    %152 = vmatprep.subr.mxu0 0.0
    %153 = vmatpush1.msra.mxu0 0.0
    %154 = vmatprep.subr.mxu0 0.0
    %155 = vmatpush1.msra.mxu0 0.0
    %156 = vmatprep.subr.mxu0 0.0
    %157 = vmatpush1.msra.mxu0 0.0
    %158 = vmatprep.subr.mxu0 0.0
    %159 = vmatpush1.msra.mxu0 0.0
    %160 = vmatprep.subr.mxu0 0.0
    %161 = vmatpush1.msra.mxu0 0.0
    %162 = vmatprep.subr.mxu0 0.0
    %163 = vmatpush1.msra.mxu0 0.0
    %164 = vmatprep.subr.mxu0 0.0
    %165 = vmatpush1.msra.mxu0 0.0
    %166 = vmatprep.subr.mxu0 0.0
    %167 = vmatpush1.msra.mxu0 0.0
    %168 = vmatprep.mubr.f32.mxu0 0.0
    %169 = vmatmul.mubr.f32.gmra.mrb[0].mxu0 %v80
    %v170 = vpop.f32.mrb[0].mxu0
    %v171 = vadd.f32 %v102, %v170
    %v172 = vpop.f32.mrb[0].mxu0
    %173 = vdwg.mxu0
    %v174 = vxor.u32 %v171, 2147483648
    %v175 = vmul.f32 %v174, 1.442695
    %v176 = vpow.pop %v175
    %v177 = vadd.f32 %v176, 1.0
    %v178 = vrcp.pop %v177
    %v179 = vmul.f32 1.0, %v178
    %v180 = vld [vmem:[#allocation7] sm:$0xff]
    %v181 = vld [vmem:[#allocation7 + $0x8] sm:$0xff]
    %v182 = vld [vmem:[#allocation7 + $0x10] sm:$0xff]
    %v183 = vld [vmem:[#allocation7 + $0x18] sm:$0xff]
    %v184 = vld [vmem:[#allocation7 + $0x20] sm:$0xff]
    %v185 = vld [vmem:[#allocation7 + $0x28] sm:$0xff]
    %v186 = vld [vmem:[#allocation7 + $0x30] sm:$0xff]
    %v187 = vld [vmem:[#allocation7 + $0x38] sm:$0xff]
    %v188 = vld [vmem:[#allocation7 + $0x40] sm:$0xff]
    %v189 = vld [vmem:[#allocation7 + $0x48] sm:$0xff]
    %v190 = vld [vmem:[#allocation7 + $0x50] sm:$0xff]
    %v191 = vld [vmem:[#allocation7 + $0x58] sm:$0xff]
    %v192 = vld [vmem:[#allocation7 + $0x60] sm:$0xff]
    %v193 = vld [vmem:[#allocation7 + $0x68] sm:$0xff]
    %v194 = vld [vmem:[#allocation7 + $0x70] sm:$0xff]
    %v195 = vld [vmem:[#allocation7 + $0x78] sm:$0xff]
    %v196 = vld [vmem:[%s4] sm:$0x1]
    %v198 = vlaneseq
    %v199 = vshrl.u32 %v198, 7
    %v200 = vsub.s32 0, %v199
    %v201 = vrot.slane %v196, %v200
    %203 = vmatprep.subr.mxu0 0.0
    %204 = vmatpush1.msra.mxu0 %v180
    %205 = vmatprep.subr.mxu0 0.0
    %206 = vmatpush1.msra.mxu0 %v181
    %207 = vmatprep.subr.mxu0 0.0
    %208 = vmatpush1.msra.mxu0 %v182
    %209 = vmatprep.subr.mxu0 0.0
    %210 = vmatpush1.msra.mxu0 %v183
    %211 = vmatprep.subr.mxu0 0.0
    %212 = vmatpush1.msra.mxu0 %v184
    %213 = vmatprep.subr.mxu0 0.0
    %214 = vmatpush1.msra.mxu0 %v185
    %215 = vmatprep.subr.mxu0 0.0
    %216 = vmatpush1.msra.mxu0 %v186
    %217 = vmatprep.subr.mxu0 0.0
    %218 = vmatpush1.msra.mxu0 %v187
    %219 = vmatprep.subr.mxu0 0.0
    %220 = vmatpush1.msra.mxu0 %v188
    %221 = vmatprep.subr.mxu0 0.0
    %222 = vmatpush1.msra.mxu0 %v189
    %223 = vmatprep.subr.mxu0 0.0
    %224 = vmatpush1.msra.mxu0 %v190
    %225 = vmatprep.subr.mxu0 0.0
    %226 = vmatpush1.msra.mxu0 %v191
    %227 = vmatprep.subr.mxu0 0.0
    %228 = vmatpush1.msra.mxu0 %v192
    %229 = vmatprep.subr.mxu0 0.0
    %230 = vmatpush1.msra.mxu0 %v193
    %231 = vmatprep.subr.mxu0 0.0
    %232 = vmatpush1.msra.mxu0 %v194
    %233 = vmatprep.subr.mxu0 0.0
    %234 = vmatpush1.msra.mxu0 %v195
    %235 = vmatprep.subr.mxu0 0.0
    %236 = vmatpush1.msra.mxu0 0.0
    %237 = vmatprep.subr.mxu0 0.0
    %238 = vmatpush1.msra.mxu0 0.0
    %239 = vmatprep.subr.mxu0 0.0
    %240 = vmatpush1.msra.mxu0 0.0
    %241 = vmatprep.subr.mxu0 0.0
    %242 = vmatpush1.msra.mxu0 0.0
    %243 = vmatprep.subr.mxu0 0.0
    %244 = vmatpush1.msra.mxu0 0.0
    %245 = vmatprep.subr.mxu0 0.0
    %246 = vmatpush1.msra.mxu0 0.0
    %247 = vmatprep.subr.mxu0 0.0
    %248 = vmatpush1.msra.mxu0 0.0
    %249 = vmatprep.subr.mxu0 0.0
    %250 = vmatpush1.msra.mxu0 0.0
    %251 = vmatprep.subr.mxu0 0.0
    %252 = vmatpush1.msra.mxu0 0.0
    %253 = vmatprep.subr.mxu0 0.0
    %254 = vmatpush1.msra.mxu0 0.0
    %255 = vmatprep.subr.mxu0 0.0
    %256 = vmatpush1.msra.mxu0 0.0
    %257 = vmatprep.subr.mxu0 0.0
    %258 = vmatpush1.msra.mxu0 0.0
    %259 = vmatprep.subr.mxu0 0.0
    %260 = vmatpush1.msra.mxu0 0.0
    %261 = vmatprep.subr.mxu0 0.0
    %262 = vmatpush1.msra.mxu0 0.0
    %263 = vmatprep.subr.mxu0 0.0
    %264 = vmatpush1.msra.mxu0 0.0
    %265 = vmatprep.subr.mxu0 0.0
    %266 = vmatpush1.msra.mxu0 0.0
    %267 = vmatprep.mubr.f32.mxu0 0.0
    %268 = vmatmul.mubr.f32.gmra.mrb[0].mxu0 %v179
    %v269 = vpop.f32.mrb[0].mxu0
    %v270 = vadd.f32 %v201, %v269
    %v271 = vpop.f32.mrb[0].mxu0
    %272 = vdwg.mxu0
    %v273 = vxor.u32 %v270, 2147483648
    %v274 = vmul.f32 %v273, 1.442695
    %v275 = vpow.pop %v274
    %v276 = vadd.f32 %v275, 1.0
    %v277 = vrcp.pop %v276
    %v278 = vmul.f32 1.0, %v277
    %v279 = vld [vmem:[#allocation8] sm:$0xff]
    %v280 = vld [vmem:[#allocation8 + $0x8] sm:$0xff]
    %v281 = vld [vmem:[#allocation8 + $0x10] sm:$0xff]
    %v282 = vld [vmem:[#allocation8 + $0x18] sm:$0xff]
    %v283 = vld [vmem:[#allocation8 + $0x20] sm:$0xff]
    %v284 = vld [vmem:[#allocation8 + $0x28] sm:$0xff]
    %v285 = vld [vmem:[#allocation8 + $0x30] sm:$0xff]
    %v286 = vld [vmem:[#allocation8 + $0x38] sm:$0xff]
    %v287 = vld [vmem:[#allocation8 + $0x40] sm:$0xff]
    %v288 = vld [vmem:[#allocation8 + $0x48] sm:$0xff]
    %v289 = vld [vmem:[#allocation8 + $0x50] sm:$0xff]
    %v290 = vld [vmem:[#allocation8 + $0x58] sm:$0xff]
    %v291 = vld [vmem:[#allocation8 + $0x60] sm:$0xff]
    %v292 = vld [vmem:[#allocation8 + $0x68] sm:$0xff]
    %v293 = vld [vmem:[#allocation8 + $0x70] sm:$0xff]
    %v294 = vld [vmem:[#allocation8 + $0x78] sm:$0xff]
    %v295 = vld [vmem:[%s6] sm:$0x1]
    %v297 = vlaneseq
    %v298 = vshrl.u32 %v297, 7
    %v299 = vsub.s32 0, %v298
    %v300 = vrot.slane %v295, %v299
    %302 = vmatprep.subr.mxu0 0.0
    %303 = vmatpush1.msra.mxu0 %v279
    %304 = vmatprep.subr.mxu0 0.0
    %305 = vmatpush1.msra.mxu0 %v280
    %306 = vmatprep.subr.mxu0 0.0
    %307 = vmatpush1.msra.mxu0 %v281
    %308 = vmatprep.subr.mxu0 0.0
    %309 = vmatpush1.msra.mxu0 %v282
    %310 = vmatprep.subr.mxu0 0.0
    %311 = vmatpush1.msra.mxu0 %v283
    %312 = vmatprep.subr.mxu0 0.0
    %313 = vmatpush1.msra.mxu0 %v284
    %314 = vmatprep.subr.mxu0 0.0
    %315 = vmatpush1.msra.mxu0 %v285
    %316 = vmatprep.subr.mxu0 0.0
    %317 = vmatpush1.msra.mxu0 %v286
    %318 = vmatprep.subr.mxu0 0.0
    %319 = vmatpush1.msra.mxu0 %v287
    %320 = vmatprep.subr.mxu0 0.0
    %321 = vmatpush1.msra.mxu0 %v288
    %322 = vmatprep.subr.mxu0 0.0
    %323 = vmatpush1.msra.mxu0 %v289
    %324 = vmatprep.subr.mxu0 0.0
    %325 = vmatpush1.msra.mxu0 %v290
    %326 = vmatprep.subr.mxu0 0.0
    %327 = vmatpush1.msra.mxu0 %v291
    %328 = vmatprep.subr.mxu0 0.0
    %329 = vmatpush1.msra.mxu0 %v292
    %330 = vmatprep.subr.mxu0 0.0
    %331 = vmatpush1.msra.mxu0 %v293
    %332 = vmatprep.subr.mxu0 0.0
    %333 = vmatpush1.msra.mxu0 %v294
    %334 = vmatprep.subr.mxu0 0.0
    %335 = vmatpush1.msra.mxu0 0.0
    %336 = vmatprep.subr.mxu0 0.0
    %337 = vmatpush1.msra.mxu0 0.0
    %338 = vmatprep.subr.mxu0 0.0
    %339 = vmatpush1.msra.mxu0 0.0
    %340 = vmatprep.subr.mxu0 0.0
    %341 = vmatpush1.msra.mxu0 0.0
    %342 = vmatprep.subr.mxu0 0.0
    %343 = vmatpush1.msra.mxu0 0.0
    %344 = vmatprep.subr.mxu0 0.0
    %345 = vmatpush1.msra.mxu0 0.0
    %346 = vmatprep.subr.mxu0 0.0
    %347 = vmatpush1.msra.mxu0 0.0
    %348 = vmatprep.subr.mxu0 0.0
    %349 = vmatpush1.msra.mxu0 0.0
    %350 = vmatprep.subr.mxu0 0.0
    %351 = vmatpush1.msra.mxu0 0.0
    %352 = vmatprep.subr.mxu0 0.0
    %353 = vmatpush1.msra.mxu0 0.0
    %354 = vmatprep.subr.mxu0 0.0
    %355 = vmatpush1.msra.mxu0 0.0
    %356 = vmatprep.subr.mxu0 0.0
    %357 = vmatpush1.msra.mxu0 0.0
    %358 = vmatprep.subr.mxu0 0.0
    %359 = vmatpush1.msra.mxu0 0.0
    %360 = vmatprep.subr.mxu0 0.0
    %361 = vmatpush1.msra.mxu0 0.0
    %362 = vmatprep.subr.mxu0 0.0
    %363 = vmatpush1.msra.mxu0 0.0
    %364 = vmatprep.subr.mxu0 0.0
    %365 = vmatpush1.msra.mxu0 0.0
    %366 = vmatprep.mubr.f32.mxu0 0.0
    %367 = vmatmul.mubr.f32.gmra.mrb[0].mxu0 %v278
    %v368 = vpop.f32.mrb[0].mxu0
    %v369 = vadd.f32 %v300, %v368
    %v370 = vpop.f32.mrb[0].mxu0
    %371 = vdwg.mxu0
    %v372 = vxor.u32 %v369, 2147483648
    %v373 = vmul.f32 %v372, 1.442695
    %v374 = vpow.pop %v373
    %v375 = vadd.f32 %v374, 1.0
    %v376 = vrcp.pop %v375
    %v377 = vmul.f32 1.0, %v376
    %v378 = vlaneseq
    %v379 = vand.u32 %v378, 127
    %vm380 = vcmp.lt.s32.totalorder %v379, 4
    %v381 = vsel %vm380, %v377, -inf
    %382 = vmax.xlane.f32.xlu0 %v381
    %v383 = vpop.xlane.xlu0 %382
    %v384 = vsub.f32 %v381, %v383
    %v385 = vmul.f32 %v384, 1.442695
    %v386 = vpow.pop %v385
    %387 = vadd.xlane.f32.xlu0 %v386
    %v388 = vpop.xlane.xlu0 %387
    %v389 = vrcp.pop %v388
    %v390 = vmul.f32 %v386, %v389
    %391 = vst [vmem:[#allocation10] sm:$0xff] %v390
    // Predicated region
    $region46: #{tpu_custom_call.1} parent=1 // pred_check
      _
    $region47: #{tpu_custom_call.1} parent=1 // pred_check_branch
      %393 = sbr.rel (0) target = $region49
    $region48: #{tpu_custom_call.1} parent=1 // pred_region
      %s395 = ssub.s32 128, 128
      %396 = vsyncadd [#allocation4], %s395
      %s398 = sshll.u32 [#allocation10], 4
      %s399 = int_to_ptr.vmem [resolvable:$true] %s398
      %401 = dma.vmem_to_hbm [thread:$0]  %s399, 128, %s7, [#allocation4]
    $region49: #{tpu_custom_call.1} parent=1 // pred_fallthru
      _
    // Predicated region
    $region50: #{tpu_custom_call.1} parent=1 // pred_check
      _
    $region51: #{tpu_custom_call.1} parent=1 // pred_check_branch
      %403 = sbr.rel (0) target = $region53
    $region52: #{tpu_custom_call.1} parent=1 // pred_region
      %404 = dma.done [#allocation4], 128
    $region53: #{tpu_custom_call.1} parent=1 // pred_fallthru
      _
    %405 = vsyncpa [#allocation3], 1
    %406 = vsyncpa [#allocation6], 1
    %407 = vsyncpa [#allocation9], 1
    %408 = vsyncpa [#allocation4], 1

</llo_original>
